<compile_context>
chip_gen: v5e
topology: v5e:2x2
jax: 0.10.0
libtpu: 0.0.40
codegen_flags: <defaults>
</compile_context>

<pallas_src>
import functools

import jax
import jax.numpy as jnp
from jax import lax
from jax.experimental import pallas as pl
from jax.experimental.pallas import tpu as pltpu


def _round_up(x, m):
    return ((x + m - 1) // m) * m


def _cdiv(a, b):
    return (a + b - 1) // b


# -----------------------------------------------------------------------------
# Kernels
# -----------------------------------------------------------------------------
def _linear_kernel_resident(x_ref, w_ref, b_ref, o_ref):
    # x_ref: (tm, F); w_ref: (F, C) resident across the whole grid (constant
    # index_map -> DMA'd once); b_ref: (1, C) f32; o_ref: (tm, C).
    acc = jnp.dot(x_ref[...], w_ref[...], preferred_element_type=jnp.float32)
    o_ref[...] = (acc + b_ref[...]).astype(o_ref.dtype)


def _linear_kernel_tiled(x_ref, w_ref, b_ref, o_ref, acc_ref):
    # x_ref: (tm, tk); w_ref: (tk, tn); b_ref: (1, tn) f32; o_ref: (tm, tn);
    # acc_ref: f32 VMEM scratch resident across the trailing K axis.
    k = pl.program_id(2)
    p = jnp.dot(x_ref[...], w_ref[...], preferred_element_type=jnp.float32)

    @pl.when(k == 0)
    def _():
        acc_ref[...] = p            # direct write: no zero-init + add pass

    @pl.when(k > 0)
    def _():
        acc_ref[...] += p

    @pl.when(k == pl.num_programs(2) - 1)
    def _():
        o_ref[...] = (acc_ref[...] + b_ref[...]).astype(o_ref.dtype)


# -----------------------------------------------------------------------------
# Forward wrappers (module-level, jitted, static tile config -> cached traces)
# -----------------------------------------------------------------------------
@functools.partial(jax.jit, static_argnames=("tile_m", "vmem_limit"))
def _forward_resident(x, w_t, b2d, *, tile_m, vmem_limit):
    B, F = x.shape
    _, C = w_t.shape
    grid_m = _cdiv(B, tile_m)
    itm_x = jnp.dtype(x.dtype).itemsize
    itm_w = jnp.dtype(w_t.dtype).itemsize
    cost = pl.CostEstimate(
        flops=2 * B * F * C,
        transcendentals=0,
        bytes_accessed=B * F * itm_x + F * C * itm_w + C * 4 + B * C * itm_x,
    )
    return pl.pallas_call(
        _linear_kernel_resident,
        out_shape=jax.ShapeDtypeStruct((B, C), x.dtype),
        grid_spec=pltpu.PrefetchScalarGridSpec(
            num_scalar_prefetch=0,
            grid=(grid_m,),
            in_specs=[
                pl.BlockSpec((tile_m, F), lambda i: (i, 0)),   # x tile
                pl.BlockSpec((F, C), lambda i: (0, 0)),        # resident weight
                pl.BlockSpec((1, C), lambda i: (0, 0)),        # resident bias
            ],
            out_specs=pl.BlockSpec((tile_m, C), lambda i: (i, 0)),
        ),
        compiler_params=pltpu.CompilerParams(
            dimension_semantics=("parallel",),
            vmem_limit_bytes=vmem_limit,
        ),
        cost_estimate=cost,
    )(x, w_t, b2d)


@functools.partial(
    jax.jit, static_argnames=("out_dim", "tile_m", "tile_n", "tile_k", "vmem_limit")
)
def _forward_tiled(x, w_p, b_p, *, out_dim, tile_m, tile_n, tile_k, vmem_limit):
    B, F = x.shape
    K_p, N_p = w_p.shape
    # Only the contraction axis must be exactly zero-padded (garbage in K would
    # corrupt the accumulation); M and N use partial edge tiles + masked stores.
    if F != K_p:
        x = jnp.pad(x, ((0, 0), (0, K_p - F)))

    grid = (_cdiv(B, tile_m), N_p // tile_n, K_p // tile_k)
    itm_x = jnp.dtype(x.dtype).itemsize
    itm_w = jnp.dtype(w_p.dtype).itemsize
    cost = pl.CostEstimate(
        flops=2 * B * K_p * N_p,
        transcendentals=0,
        bytes_accessed=(grid[1] * B * K_p * itm_x          # x re-streamed per N tile
                        + grid[0] * K_p * N_p * itm_w      # W re-streamed per M tile
                        + grid[0] * N_p * 4                # bias
                        + B * out_dim * itm_x),            # output
    )
    return pl.pallas_call(
        _linear_kernel_tiled,
        out_shape=jax.ShapeDtypeStruct((B, out_dim), x.dtype),
        grid_spec=pltpu.PrefetchScalarGridSpec(
            num_scalar_prefetch=0,
            grid=grid,
            in_specs=[
                pl.BlockSpec((tile_m, tile_k), lambda i, j, k: (i, k)),  # x
                pl.BlockSpec((tile_k, tile_n), lambda i, j, k: (k, j)),  # W^T (padded)
                pl.BlockSpec((1, tile_n), lambda i, j, k: (0, j)),       # bias
            ],
            out_specs=pl.BlockSpec((tile_m, tile_n), lambda i, j, k: (i, j)),
            scratch_shapes=[pltpu.VMEM((tile_m, tile_n), jnp.float32)],
        ),
        compiler_params=pltpu.CompilerParams(
            dimension_semantics=("parallel", "parallel", "arbitrary"),
            vmem_limit_bytes=vmem_limit,
        ),
        cost_estimate=cost,
    )(x, w_p, b_p)


# -----------------------------------------------------------------------------
# Layer wrapper: one-time weight prep (transpose / pad) + tile-config logic
# -----------------------------------------------------------------------------
class FullLayerPallas:
    """Pallas-TPU equivalent of Full_layer (nn.Linear: y = x @ W^T + b)."""

    # Conservative per-kernel VMEM working-set budget: safe on v7x (64 MiB
    # physical per TensorCore) and comfortably within v5e/v6e (128 MiB).
    _VMEM_BUDGET = 28 << 20

    def __init__(self, weight, bias, *, tile_m=None, tile_n=None, tile_k=None,
                 force_pallas=False):
        weight = jnp.asarray(weight)
        bias = jnp.asarray(bias)
        assert weight.ndim == 2 and bias.ndim == 1 and bias.shape[0] == weight.shape[0]
        C, F = weight.shape
        self.feature_num = int(F)
        self.class_num = int(C)
        self.force_pallas = bool(force_pallas)

        w_itm = jnp.dtype(weight.dtype).itemsize
        w_t = weight.T                       # (F, C): one-time transpose (hoisted)
        self._w_plain = w_t                  # for the tiny-problem XLA fallback
        self._b_plain = bias

        # --- path selection --------------------------------------------------
        resident_fixed = 2 * F * C * w_itm + 2 * C * 4          # weight + bias, dbl-buffered
        per_row = 2 * F * w_itm + 2 * C * w_itm                 # x + out tile bytes per row
        self._resident = (tile_n is None and tile_k is None
                          and resident_fixed + 8 * per_row <= self._VMEM_BUDGET)

        if self._resident:
            self._w = w_t
            self._b = bias.astype(jnp.float32).reshape(1, C)
            if tile_m is not None:
                self._tile_m_fixed = True
                self._tile_m_cap = int(tile_m)
            else:
                rows_cap = max(8, (self._VMEM_BUDGET - resident_fixed) // max(per_row, 1))
                self._tile_m_fixed = False
                self._tile_m_cap = int(min(1024, rows_cap))
        else:
            if tile_n is None:
                tile_n = min(512, _round_up(C, 128))
            if tile_k is None:
                K_p128 = _round_up(F, 128)
                if K_p128 <= 2048:
                    tile_k = K_p128
                else:
                    blocks = K_p128 // 128
                    div = max(d for d in range(1, 17) if blocks % d == 0)
                    tile_k = div * 128
            tile_n = int(tile_n)
            tile_k = int(tile_k)
            K_p = _round_up(F, tile_k)
            N_p = _round_up(C, tile_n)
            # One-time zero padding (hoisted). K padding is REQUIRED for
            # correctness; N padding keeps the weight lane-dense.
            w_p = w_t
            if (K_p, N_p) != (F, C):
                w_p = jnp.pad(w_t, ((0, K_p - F), (0, N_p - C)))
            b_p = jnp.pad(bias.astype(jnp.float32).reshape(1, C),
                          ((0, 0), (0, N_p - C)))
            self._w = w_p
            self._b = b_p
            self._tile_n = tile_n
            self._tile_k = tile_k
            self._tile_m_user = None if tile_m is None else int(tile_m)

    # --- tile / VMEM helpers -------------------------------------------------
    def _pick_resident_tile_m(self, B):
        if self._tile_m_fixed:
            return int(self._tile_m_cap)
        cap = self._tile_m_cap
        tile_m = B if B <= cap else max(8, (cap // 8) * 8)
        # v7x megacore: give both TensorCores work when the batch is large.
        if _cdiv(B, tile_m) < 2 and B >= 256:
            tile_m = _round_up(_cdiv(B, 2), 8)
        return int(tile_m)

    def _default_tiled_tile_m(self, B):
        tile_m = min(512, _round_up(B, 8))
        grid_n = self._w.shape[1] // self._tile_n
        if grid_n * _cdiv(B, tile_m) < 2 and B >= 256:
            tile_m = _round_up(_cdiv(B, 2), 8)
        return int(tile_m)

    def _resident_vmem_limit(self, tile_m, x_dtype):
        itm = jnp.dtype(x_dtype).itemsize
        w_itm = jnp.dtype(self._w.dtype).itemsize
        F, C = self.feature_num, self.class_num
        ws = (2 * F * C * w_itm + 2 * tile_m * F * itm
              + 2 * tile_m * C * itm + 2 * C * 4)
        return int(min(max(int(1.4 * ws) + (2 << 20), 16 << 20), 48 << 20))

    def _tiled_vmem_limit(self, tile_m, x_dtype):
        itm = jnp.dtype(x_dtype).itemsize
        w_itm = jnp.dtype(self._w.dtype).itemsize
        tm, tn, tk = tile_m, self._tile_n, self._tile_k
        ws = (2 * tm * tk * itm + 2 * tk * tn * w_itm + 2 * tm * tn * itm
              + tm * tn * 4 + 2 * tn * 4)
        return int(min(max(int(1.4 * ws) + (2 << 20), 16 << 20), 48 << 20))

    # --- forward -------------------------------------------------------------
    def __call__(self, x):
        x = jnp.asarray(x)
        assert x.ndim == 2 and x.shape[1] == self.feature_num, "feature dim mismatch"
        B = int(x.shape[0])
        F, C = self.feature_num, self.class_num

        # Tiny problems: the Pallas grid's fixed overhead dominates; let XLA
        # fuse the matmul with its neighbours instead.
        if not self.force_pallas and 2 * B * F * C < (1 << 20):
            return (jnp.dot(x, self._w_plain) + self._b_plain).astype(x.dtype)

        if self._resident:
            tile_m = self._pick_resident_tile_m(B)
            return _forward_resident(
                x, self._w, self._b,
                tile_m=tile_m,
                vmem_limit=self._resident_vmem_limit(tile_m, x.dtype))

        tile_m = (self._tile_m_user if self._tile_m_user is not None
                  else self._default_tiled_tile_m(B))
        return _forward_tiled(
            x, self._w, self._b,
            out_dim=C, tile_m=int(tile_m),
            tile_n=self._tile_n, tile_k=self._tile_k,
            vmem_limit=self._tiled_vmem_limit(tile_m, x.dtype))


if __name__ == "__main__":
    key = jax.random.PRNGKey(0)
    k1, k2, k3, k4, k5, k6 = jax.random.split(key, 6)

    # --- Test 1: the actual Full_layer use case (small classifier head) ->
    # resident-weight fast path (forced so the Pallas kernel really runs).
    batch, feature_num, class_num = 8, 32, 16
    bound = 1.0 / (feature_num ** 0.5)
    x = jax.random.normal(k1, (batch, feature_num), dtype=jnp.float32)
    weight = jax.random.uniform(k2, (class_num, feature_num), jnp.float32, -bound, bound)
    bias = jax.random.uniform(k3, (class_num,), jnp.float32, -bound, bound)

    layer = FullLayerPallas(weight, bias, force_pallas=True)
    out = jax.block_until_ready(layer(x))
    ref = jnp.dot(x, weight.T, precision=lax.Precision.HIGHEST) + bias
    assert out.shape == (batch, class_num)
    assert jnp.allclose(out, ref, atol=1e-5, rtol=1e-5), "resident-path mismatch"

    # --- Test 2: general (M, N, K)-tiled path with partial edge tiles and
    # K padding (odd shapes, explicit small tiles).
    B2, F2, C2 = 200, 200, 250
    bound2 = 1.0 / (F2 ** 0.5)
    x2 = jax.random.normal(k4, (B2, F2), dtype=jnp.float32)
    w2 = jax.random.uniform(k5, (C2, F2), jnp.float32, -bound2, bound2)
    b2 = jax.random.uniform(k6, (C2,), jnp.float32, -bound2, bound2)
    layer2 = FullLayerPallas(w2, b2, tile_m=128, tile_n=128, tile_k=128,
                             force_pallas=True)
    out2 = jax.block_until_ready(layer2(x2))
    ref2 = jnp.dot(x2, w2.T, precision=lax.Precision.HIGHEST) + b2
    assert out2.shape == (B2, C2)
    assert jnp.allclose(out2, ref2, atol=1e-4, rtol=1e-4), "tiled-path mismatch"

    # --- Test 3: tiny-problem XLA fallback (no Pallas overhead).
    layer3 = FullLayerPallas(weight, bias)          # force_pallas=False
    out3 = jax.block_until_ready(layer3(x))
    assert out3.shape == (batch, class_num)
    assert jnp.allclose(out3, ref, atol=1e-2, rtol=1e-2), "fallback mismatch"

    print("KERNEL_OK")
</pallas_src>

<mosaic_0001>
module attributes {stable_mosaic.version = 11 : i64} {
  func.func @_linear_kernel_resident(%arg0: i32, %arg1: memref<8x32xf32, #tpu.memory_space<vmem>>, %arg2: memref<32x16xf32, #tpu.memory_space<vmem>>, %arg3: memref<1x16xf32, #tpu.memory_space<vmem>>, %arg4: memref<8x16xf32, #tpu.memory_space<vmem>>) attributes {dimension_semantics = [#tpu.dimension_semantics<parallel>], iteration_bounds = array<i64: 1>, scalar_prefetch = 0 : i64, scratch_operands = 0 : i64, tpu.core_type = #tpu.core_type<tc>, window_params = [{transform_indices = @transform_0, window_bounds = array<i64: 8, 32>}, {pipeline_mode = #tpu.pipeline_mode<synchronous>, transform_indices = @transform_1, window_bounds = array<i64: 32, 16>}, {pipeline_mode = #tpu.pipeline_mode<synchronous>, transform_indices = @transform_2, window_bounds = array<i64: 1, 16>}, {transform_indices = @transform_3, window_bounds = array<i64: 8, 16>}]} {
    %c0 = arith.constant 0 : index
    %c0_0 = arith.constant 0 : index
    %0 = vector.load %arg1[%c0, %c0_0] : memref<8x32xf32, #tpu.memory_space<vmem>>, vector<8x32xf32>
    %c0_1 = arith.constant 0 : index
    %c0_2 = arith.constant 0 : index
    %1 = vector.load %arg2[%c0_1, %c0_2] : memref<32x16xf32, #tpu.memory_space<vmem>>, vector<32x16xf32>
    %cst = arith.constant dense<0.000000e+00> : vector<8x16xf32>
    %2 = tpu.matmul %0, %1, %cst {dimension_numbers = #tpu.dot_dimension_numbers<[1], [0], [0], [1], [0, 0, 1, 1], [], []>} : vector<8x32xf32>, vector<32x16xf32>, vector<8x16xf32> -> vector<8x16xf32>
    %c0_3 = arith.constant 0 : index
    %c0_4 = arith.constant 0 : index
    %3 = vector.load %arg3[%c0_3, %c0_4] : memref<1x16xf32, #tpu.memory_space<vmem>>, vector<1x16xf32>
    %4 = vector.broadcast %3 : vector<1x16xf32> to vector<8x16xf32>
    %5 = arith.addf %2, %4 : vector<8x16xf32>
    %c0_5 = arith.constant 0 : index
    %c0_6 = arith.constant 0 : index
    %6 = vector.load %arg4[%c0_5, %c0_6] : memref<8x16xf32, #tpu.memory_space<vmem>>, vector<8x16xf32>
    tpu.vector_store %arg4[%c0_5, %c0_6], %5 {strides = array<i32>} : memref<8x16xf32, #tpu.memory_space<vmem>>, vector<8x16xf32>,
    return
  }
  func.func @transform_0(%arg0: i32) -> (i32, i32) {
    %c0_i32 = arith.constant 0 : i32
    %c0_i32_0 = arith.constant 0 : i32
    return %arg0, %c0_i32 : i32, i32
  }
  func.func @transform_1(%arg0: i32) -> (i32, i32) {
    %c0_i32 = arith.constant 0 : i32
    %c0_i32_0 = arith.constant 0 : i32
    %c0_i32_1 = arith.constant 0 : i32
    return %c0_i32, %c0_i32_0 : i32, i32
  }
  func.func @transform_2(%arg0: i32) -> (i32, i32) {
    %c0_i32 = arith.constant 0 : i32
    %c0_i32_0 = arith.constant 0 : i32
    %c0_i32_1 = arith.constant 0 : i32
    return %c0_i32, %c0_i32_0 : i32, i32
  }
  func.func @transform_3(%arg0: i32) -> (i32, i32) {
    %c0_i32 = arith.constant 0 : i32
    %c0_i32_0 = arith.constant 0 : i32
    return %arg0, %c0_i32 : i32, i32
  }
}

</mosaic_0001>

<llo_original>
// kernel: _forward_resident.1
$region0: #{_forward_resident.1}
  #allocation0 [shape = 'u32[]', space=smem, size = 0x4, offset = 0x4, fixed_abs, tag = 'smem constant byte address 0x4 - core index']
  #allocation1 [shape = 'u32[72,128]{1,0:T(1,128)}', space=vmem, size = 0x9000, scoped, tag = 'internal scratch']
  %s0 = inlined_call_operand.vmem [shape: f32[8,32], index: 0, kind: input, shape index: {}]
  %s1 = inlined_call_operand.vmem [shape: f32[32,16], index: 1, kind: input, shape index: {}]
  %s2 = inlined_call_operand.vmem [shape: f32[1,16], index: 2, kind: input, shape index: {}]
  %s3 = inlined_call_operand.hbm [shape: f32[8,16], index: 3, kind: output, shape index: {}]
  %s4 = sld [smem:[#allocation0]]
  $region22: #{_forward_resident.1} parent=0
    _
  %s6 = ssub.s32 1, %s4
  %s7 = scalar_select 0, %s6, %s4
  $region1: #{_forward_resident.1} parent=0
    #allocation2 [shape = 'u8[4096]{0}', space=vmem, size = 0x1000, scoped, tag = 'output window, operand 0, single buffered']
    #allocation3 [shape = 's32[1]{0}', space=sflag, size = 0x4, scoped, tag = 'scoped memory for _forward_resident.1']
    %8 = vsyncpa [#allocation3], 0
    // Predicated region
    $region2: #{_forward_resident.1} parent=1 // pred_check
      _
    $region3: #{_forward_resident.1} parent=1 // pred_check_branch
      %10 = sbr.rel (0) target = $region5
    $region4: #{_forward_resident.1} parent=1 // pred_region
      _
    $region5: #{_forward_resident.1} parent=1 // pred_fallthru
      _
    // Predicated region
    $region6: #{_forward_resident.1} parent=1 // pred_check
      _
    $region7: #{_forward_resident.1} parent=1 // pred_check_branch
      %12 = sbr.rel (0) target = $region9
    $region8: #{_forward_resident.1} parent=1 // pred_region
      _
    $region9: #{_forward_resident.1} parent=1 // pred_fallthru
      _
    // Predicated region
    $region10: #{_forward_resident.1} parent=1 // pred_check
      _
    $region11: #{_forward_resident.1} parent=1 // pred_check_branch
      %14 = sbr.rel (0) target = $region13
    $region12: #{_forward_resident.1} parent=1 // pred_region
      _
    $region13: #{_forward_resident.1} parent=1 // pred_fallthru
      _
    %v15 = vld [vmem:[%s0] sm:$0xff]
    %v16 = vld [vmem:[%s1] sm:$0xff]
    %v17 = vld [vmem:[%s1 + $0x8] sm:$0xff]
    %v18 = vld [vmem:[%s1 + $0x10] sm:$0xff]
    %v19 = vld [vmem:[%s1 + $0x18] sm:$0xff]
    %v20 = vld [vmem:[%s2] sm:$0x1]
    %v22 = vperm.slane %v20, 0
    %vm24 = vcmask 261120
    %v26 = vsel %vm24, %v15, 0
    %28 = vmatpush.msra.mxu0 0.0
    %29 = vmatpush.msra.mxu0 0.0
    %30 = vmatpush.msra.mxu0 0.0
    %31 = vmatpush.msra.mxu0 0.0
    %32 = vmatpush.msra.mxu0 0.0
    %33 = vmatpush.msra.mxu0 0.0
    %34 = vmatpush.msra.mxu0 0.0
    %35 = vmatpush.msra.mxu0 0.0
    %36 = vmatpush.msra.mxu0 0.0
    %37 = vmatpush.msra.mxu0 0.0
    %38 = vmatpush.msra.mxu0 0.0
    %39 = vmatpush.msra.mxu0 0.0
    %40 = vmatpush.msra.mxu0 %v19
    %41 = vmatpush.msra.mxu0 %v18
    %42 = vmatpush.msra.mxu0 %v17
    %43 = vmatpush.msra.mxu0 %v16
    %44 = vmatmul.f32.gmra.mxu0 %v26
    %v45 = vpop.f32.mrf.mxu0
    %v46 = vadd.f32 %v22, %v45
    %47 = vdwg.mxu0
    %vm48 = vcmask 130048
    %49 = vst.msk [vmem:[#allocation2] sm:$0xff] %vm48, %v46
    // Predicated region
    $region14: #{_forward_resident.1} parent=1 // pred_check
      _
    $region15: #{_forward_resident.1} parent=1 // pred_check_branch
      %51 = sbr.rel (0) target = $region17
    $region16: #{_forward_resident.1} parent=1 // pred_region
      %53 = vsyncadd [#allocation3], 0
      %s55 = sshll.u32 [#allocation2], 4
      %s56 = int_to_ptr.vmem [resolvable:$true] %s55
      %s57 = sshll.u32 %s3, 4
      %s58 = int_to_ptr.hbm [resolvable:$true] %s57
      %60 = dma.vmem_to_hbm [thread:$0]  %s56, 128, %s58, [#allocation3]
    $region17: #{_forward_resident.1} parent=1 // pred_fallthru
      _
    // Predicated region
    $region18: #{_forward_resident.1} parent=1 // pred_check
      _
    $region19: #{_forward_resident.1} parent=1 // pred_check_branch
      %62 = sbr.rel (0) target = $region21
    $region20: #{_forward_resident.1} parent=1 // pred_region
      %64 = dma.done [#allocation3], 128
    $region21: #{_forward_resident.1} parent=1 // pred_fallthru
      _
    %65 = vsyncpa [#allocation3], 1

</llo_original>
